<compile_context>
chip_gen: v7x
topology: tpu7x:2x2x1
jax: 0.10.0
libtpu: 0.0.40
codegen_flags: <defaults>
</compile_context>

<pallas_src>
import functools

import jax
import jax.numpy as jnp
import numpy as np
from jax.experimental import pallas as pl
from jax.experimental.pallas import tpu as pltpu


def node_model_kernel(e_ref, w3_ref, b3_ref, w4a_ref, ba_ref, o_ref, *, inv_l):
    # e_ref  : (C, TL)   streamed edge_attr tile (native dtype: f32 or bf16)
    # w3_ref : (C, C)    conv3 weight, f32, resident (constant index_map)
    # b3_ref : (C, 1)    conv3 bias, f32
    # w4a_ref: (2, C)    row 0 = conv4 weight, row 1 = ones (channel sum), f32
    # ba_ref : (2, 1)    row 0 = conv4 bias,   row 1 = 0, f32
    # o_ref  : (1, TL)   single lane-dense output row (f32)
    e = e_ref[...].astype(jnp.float32)          # VPU convert; no-op for f32 input

    # conv3 (kernel_size=1) + bias + ReLU: MXU matmul, f32 accumulate,
    # all elementwise kept in f32 (v5e VPU/EUP have no bf16).
    h = jnp.dot(w3_ref[...], e, preferred_element_type=jnp.float32)
    h = jnp.maximum(h + b3_ref[...], 0.0)                             # (C, TL)

    # Fused conv4 logits + channel sum: one (2, C) @ (C, TL) MXU matmul.
    z = jnp.dot(w4a_ref[...], h, preferred_element_type=jnp.float32) + ba_ref[...]
    mask = jax.nn.sigmoid(z[0:1, :])                                  # (1, TL)
    col = z[1:2, :]                                                   # colsum(h)

    # colsum(h * (1 + mask)) == colsum(h) * (1 + mask)  (mask is per-column)
    o_ref[...] = (col * (1.0 + mask) * inv_l).astype(o_ref.dtype)


def prepare_node_model_params(params):
    """One-time parameter prep (hoisted out of the per-call forward).

    Stacks the conv4 weight with a ones-row so one MXU matmul produces both
    the sigmoid logits and colsum(h); shapes biases into column vectors.
    """
    w3, b3, w4, b4 = params
    C = w3.shape[0]
    w3f = jnp.asarray(w3, jnp.float32).reshape(C, C)                 # (C, C) resident
    b3c = jnp.asarray(b3, jnp.float32).reshape(C, 1)                 # (C, 1)
    w4a = jnp.concatenate(
        [jnp.asarray(w4, jnp.float32).reshape(1, C),
         jnp.ones((1, C), jnp.float32)], axis=0)                     # (2, C)
    ba = jnp.concatenate(
        [jnp.asarray(b4, jnp.float32).reshape(1, 1),
         jnp.zeros((1, 1), jnp.float32)], axis=0)                    # (2, 1)
    return w3f, b3c, w4a, ba


def _tensorcores_per_chip():
    """Best-effort TensorCores-per-chip (2 on v7x/v4/v5p, 1 on v5e/v6e)."""
    try:
        d = jax.devices()[0]
        n = getattr(d, "num_cores", None)
        if isinstance(n, int) and n in (1, 2):
            return n
        kind = str(getattr(d, "device_kind", "")).lower()
        if any(tok in kind for tok in ("v7", "tpu7", "v4", "v5p")):
            return 2
    except Exception:
        pass
    return 1


def _pick_tile_l(L, C, e_bytes, *, num_cores, budget_bytes=16 * 1024 * 1024):
    """Largest lane-dense (multiple-of-128) tile within a VMEM byte budget.

    Per-column VMEM cost ~ double-buffered streamed e tile + f32 h
    intermediate + (2, TL) logits/colsum + double-buffered f32 output row.
    On 2-TC chips the tile is capped at L // num_cores so the 'parallel' grid
    axis has >= num_cores steps and both TensorCores get work.
    """
    budget = max(0, budget_bytes - 2 * (C * C + C + 2 * C + 2) * 4)  # resident weights
    per_col = 2 * C * e_bytes + 4 * C + 4 * 2 + 2 * 4
    t = max(1, budget // per_col)
    if num_cores > 1:
        t = min(t, max(1, L // num_cores))
    if t >= L:
        return int(L)
    t = (t // 128) * 128
    return int(max(t, min(L, 128)))


def _edge_spec(C, tile_l, buffers):
    """BlockSpec for the streamed edge_attr tile, optionally >2-deep buffered."""
    index_map = lambda i: (0, i)
    if buffers > 2:
        try:
            return pl.BlockSpec((C, tile_l), index_map,
                                pipeline_mode=pl.Buffered(buffers))
        except (TypeError, AttributeError):
            pass  # older API: fall back to default double-buffering
    return pl.BlockSpec((C, tile_l), index_map)


def node_model_forward(x, edge_index, edge_attr, prepared_params, *, tile_l=None):
    """x: (node_num, node_h), edge_attr: (C, L). Returns (node_num, L) f32.

    `prepared_params` comes from prepare_node_model_params() (call it once).
    If passing tile_l explicitly, use a multiple of 128 (or the full L).
    """
    del edge_index                                # unused by the PyTorch forward
    node_num = x.shape[0]
    C, L = edge_attr.shape
    w3f, b3c, w4a, ba = prepared_params

    # Stream edge_attr in its native dtype; a wrapper cast would add an extra
    # HBM round trip. bf16-upstream inputs halve the dominant HBM traffic.
    e_bytes = edge_attr.dtype.itemsize
    num_cores = _tensorcores_per_chip()
    if tile_l is None:
        tile_l = _pick_tile_l(L, C, e_bytes, num_cores=num_cores)
    num_steps = int(pl.cdiv(L, tile_l))

    # Deeper input buffering only pays when there are several small steps;
    # otherwise the big tiles already hide the DMA.
    in_buffers = 3 if num_steps >= 3 else 2
    e_spec = _edge_spec(C, tile_l, in_buffers)

    # VMEM actually needed: pipelined e/out buffers + f32 intermediates +
    # resident weights.  Cap at 48 MiB so large-C configs still fit v7x's
    # 64 MiB physical VMEM.
    vmem_need = (in_buffers * C * tile_l * e_bytes        # e buffers
                 + 2 * 1 * tile_l * 4                     # out-row buffers
                 + C * tile_l * 4 + 2 * tile_l * 4        # h, z intermediates
                 + 2 * (C * C + C + 2 * C + 2) * 4)       # resident weights
    vmem_limit = int(min(48 * 1024 * 1024,
                         max(32 * 1024 * 1024, vmem_need * 5 // 4)))

    cost = pl.CostEstimate(
        flops=int(2 * C * C * L + 2 * 2 * C * L + 6 * L),
        transcendentals=int(L),                           # sigmoid
        bytes_accessed=int(C * L * e_bytes + (C * C + C + 2 * C + 2) * 4 + L * 4),
    )

    row = pl.pallas_call(
        functools.partial(node_model_kernel, inv_l=1.0 / float(L)),
        out_shape=jax.ShapeDtypeStruct((1, L), jnp.float32),
        grid_spec=pltpu.PrefetchScalarGridSpec(
            num_scalar_prefetch=0,
            grid=(num_steps,),
            in_specs=[
                e_spec,                                    # streamed edge_attr tile
                pl.BlockSpec((C, C), lambda i: (0, 0)),    # w3 (resident, f32)
                pl.BlockSpec((C, 1), lambda i: (0, 0)),    # b3
                pl.BlockSpec((2, C), lambda i: (0, 0)),    # [w4; ones]
                pl.BlockSpec((2, 1), lambda i: (0, 0)),    # [b4; 0]
            ],
            out_specs=pl.BlockSpec((1, tile_l), lambda i: (0, i)),
        ),
        compiler_params=pltpu.CompilerParams(
            dimension_semantics=("parallel",),   # shards L across TCs on 2-TC parts
            vmem_limit_bytes=vmem_limit,
        ),
        cost_estimate=cost,
    )(edge_attr, w3f, b3c, w4a, ba)

    # ones(node_num, C) @ h2 yields node_num identical rows: broadcast outside
    # the kernel (lane-dense unmasked stores, node_num x less HBM writeback).
    return jnp.broadcast_to(row, (node_num, L))


def init_params(key, C):
    """Deterministic synthetic weights for conv3 / conv4 (kernel_size=1)."""
    k1, k2, k3, k4 = jax.random.split(key, 4)
    scale = 1.0 / np.sqrt(C)
    w3 = jax.random.uniform(k1, (C, C), jnp.float32, -scale, scale)
    b3 = jax.random.uniform(k2, (C,), jnp.float32, -scale, scale)
    w4 = jax.random.uniform(k3, (1, C), jnp.float32, -scale, scale)
    b4 = jax.random.uniform(k4, (1,), jnp.float32, -scale, scale)
    return w3, b3, w4, b4


def reference_forward(x, edge_attr, params):
    """Pure-JAX reference reproducing the PyTorch forward."""
    w3, b3, w4, b4 = params
    node_num = x.shape[0]
    h = jnp.maximum(w3 @ edge_attr + b3.reshape(-1, 1), 0.0)
    mask = jax.nn.sigmoid(w4 @ h + b4.reshape(1, 1))      # (1, L)
    h2 = h + h * mask
    rel = jnp.ones((node_num, h2.shape[0]), jnp.float32)
    incoming = rel @ h2
    return incoming / incoming.shape[1]


if __name__ == "__main__":
    # Small shapes: channel_dim=8, time_reduce_size=1 -> C = 2*8 = 16; L = 512.
    node_num, node_h, C, L = 4, 32, 16, 512

    key = jax.random.PRNGKey(0)
    kx, ke, kp = jax.random.split(key, 3)
    x = jax.random.normal(kx, (node_num, node_h), jnp.float32)
    edge_index = jnp.zeros((2, 8), jnp.int32)              # unused by the forward
    edge_attr = jax.random.normal(ke, (C, L), jnp.float32)
    params = init_params(kp, C)
    prepared = prepare_node_model_params(params)           # hoisted, reused per call

    ref = reference_forward(x, edge_attr, params)

    # Default path: VMEM-budgeted tile (1 grid step on 1-TC chips, >=2 on 2-TC).
    out = node_model_forward(x, edge_index, edge_attr, prepared)
    out = jax.block_until_ready(out)
    np.testing.assert_allclose(np.asarray(out), np.asarray(ref), rtol=1e-5, atol=1e-5)

    # Multi-step pipeline path (exercises streamed tiles / deeper buffering).
    out_ms = node_model_forward(x, edge_index, edge_attr, prepared, tile_l=128)
    out_ms = jax.block_until_ready(out_ms)
    np.testing.assert_allclose(np.asarray(out_ms), np.asarray(ref), rtol=1e-5, atol=1e-5)

    # bf16 edge_attr produced UPSTREAM (no wrapper cast inside the forward):
    # streams half the HBM bytes; f32 math inside the kernel.
    out_bf = node_model_forward(x, edge_index, edge_attr.astype(jnp.bfloat16), prepared)
    out_bf = jax.block_until_ready(out_bf)
    np.testing.assert_allclose(np.asarray(out_bf), np.asarray(ref), rtol=3e-2, atol=3e-3)

    print("KERNEL_OK")
</pallas_src>

<mosaic_0001>
module attributes {stable_mosaic.version = 11 : i64} {
  func.func @node_model_kernel(%arg0: i32, %arg1: memref<16x512xf32, #tpu.memory_space<vmem>>, %arg2: memref<16x16xf32, #tpu.memory_space<vmem>>, %arg3: memref<16x1xf32, #tpu.memory_space<vmem>>, %arg4: memref<2x16xf32, #tpu.memory_space<vmem>>, %arg5: memref<2x1xf32, #tpu.memory_space<vmem>>, %arg6: memref<1x512xf32, #tpu.memory_space<vmem>>) attributes {dimension_semantics = [#tpu.dimension_semantics<parallel>], iteration_bounds = array<i64: 1>, scalar_prefetch = 0 : i64, scratch_operands = 0 : i64, tpu.core_type = #tpu.core_type<tc>, window_params = [{transform_indices = @transform_0, window_bounds = array<i64: 16, 512>}, {pipeline_mode = #tpu.pipeline_mode<synchronous>, transform_indices = @transform_1, window_bounds = array<i64: 16, 16>}, {pipeline_mode = #tpu.pipeline_mode<synchronous>, transform_indices = @transform_2, window_bounds = array<i64: 16, 1>}, {pipeline_mode = #tpu.pipeline_mode<synchronous>, transform_indices = @transform_3, window_bounds = array<i64: 2, 16>}, {pipeline_mode = #tpu.pipeline_mode<synchronous>, transform_indices = @transform_4, window_bounds = array<i64: 2, 1>}, {transform_indices = @transform_5, window_bounds = array<i64: 1, 512>}]} {
    %c0 = arith.constant 0 : index
    %c0_0 = arith.constant 0 : index
    %0 = vector.load %arg1[%c0, %c0_0] : memref<16x512xf32, #tpu.memory_space<vmem>>, vector<16x512xf32>
    %c0_1 = arith.constant 0 : index
    %c0_2 = arith.constant 0 : index
    %1 = vector.load %arg2[%c0_1, %c0_2] : memref<16x16xf32, #tpu.memory_space<vmem>>, vector<16x16xf32>
    %cst = arith.constant dense<0.000000e+00> : vector<16x512xf32>
    %2 = tpu.matmul %1, %0, %cst {dimension_numbers = #tpu.dot_dimension_numbers<[1], [0], [0], [1], [0, 0, 1, 1], [], []>} : vector<16x16xf32>, vector<16x512xf32>, vector<16x512xf32> -> vector<16x512xf32>
    %c0_3 = arith.constant 0 : index
    %c0_4 = arith.constant 0 : index
    %3 = vector.load %arg3[%c0_3, %c0_4] : memref<16x1xf32, #tpu.memory_space<vmem>>, vector<16x1xf32>
    %4 = vector.broadcast %3 : vector<16x1xf32> to vector<16x512xf32>
    %5 = arith.addf %2, %4 : vector<16x512xf32>
    %cst_5 = arith.constant 0.000000e+00 : f32
    %6 = vector.broadcast %cst_5 : f32 to vector<16x512xf32>
    %7 = arith.maximumf %5, %6 : vector<16x512xf32>
    %c0_6 = arith.constant 0 : index
    %c0_7 = arith.constant 0 : index
    %8 = vector.load %arg4[%c0_6, %c0_7] : memref<2x16xf32, #tpu.memory_space<vmem>>, vector<2x16xf32>
    %cst_8 = arith.constant dense<0.000000e+00> : vector<2x512xf32>
    %9 = tpu.matmul %8, %7, %cst_8 {dimension_numbers = #tpu.dot_dimension_numbers<[1], [0], [0], [1], [0, 0, 1, 1], [], []>} : vector<2x16xf32>, vector<16x512xf32>, vector<2x512xf32> -> vector<2x512xf32>
    %c0_9 = arith.constant 0 : index
    %c0_10 = arith.constant 0 : index
    %10 = vector.load %arg5[%c0_9, %c0_10] : memref<2x1xf32, #tpu.memory_space<vmem>>, vector<2x1xf32>
    %11 = vector.broadcast %10 : vector<2x1xf32> to vector<2x512xf32>
    %12 = arith.addf %9, %11 : vector<2x512xf32>
    %13 = vector.extract_strided_slice %12 {offsets = [0, 0], sizes = [1, 512], strides = [1, 1]} : vector<2x512xf32> to vector<1x512xf32>
    %14 = arith.negf %13 : vector<1x512xf32>
    %15 = math.exp %14 : vector<1x512xf32>
    %cst_11 = arith.constant 1.000000e+00 : f32
    %16 = vector.broadcast %cst_11 : f32 to vector<1x512xf32>
    %17 = arith.addf %16, %15 : vector<1x512xf32>
    %18 = arith.divf %16, %17 : vector<1x512xf32>
    %19 = vector.extract_strided_slice %12 {offsets = [1, 0], sizes = [1, 512], strides = [1, 1]} : vector<2x512xf32> to vector<1x512xf32>
    %cst_12 = arith.constant 1.000000e+00 : f32
    %20 = vector.broadcast %cst_12 : f32 to vector<1x512xf32>
    %21 = arith.addf %20, %18 : vector<1x512xf32>
    %22 = arith.mulf %19, %21 : vector<1x512xf32>
    %cst_13 = arith.constant 0.001953125 : f32
    %23 = vector.broadcast %cst_13 : f32 to vector<1x512xf32>
    %24 = arith.mulf %22, %23 : vector<1x512xf32>
    %c0_14 = arith.constant 0 : index
    %c0_15 = arith.constant 0 : index
    %25 = vector.load %arg6[%c0_14, %c0_15] : memref<1x512xf32, #tpu.memory_space<vmem>>, vector<1x512xf32>
    tpu.vector_store %arg6[%c0_14, %c0_15], %24 {strides = array<i32>} : memref<1x512xf32, #tpu.memory_space<vmem>>, vector<1x512xf32>,
    return
  }
  func.func @transform_0(%arg0: i32) -> (i32, i32) {
    %c0_i32 = arith.constant 0 : i32
    %c0_i32_0 = arith.constant 0 : i32
    return %c0_i32, %arg0 : i32, i32
  }
  func.func @transform_1(%arg0: i32) -> (i32, i32) {
    %c0_i32 = arith.constant 0 : i32
    %c0_i32_0 = arith.constant 0 : i32
    %c0_i32_1 = arith.constant 0 : i32
    return %c0_i32, %c0_i32_0 : i32, i32
  }
  func.func @transform_2(%arg0: i32) -> (i32, i32) {
    %c0_i32 = arith.constant 0 : i32
    %c0_i32_0 = arith.constant 0 : i32
    %c0_i32_1 = arith.constant 0 : i32
    return %c0_i32, %c0_i32_0 : i32, i32
  }
  func.func @transform_3(%arg0: i32) -> (i32, i32) {
    %c0_i32 = arith.constant 0 : i32
    %c0_i32_0 = arith.constant 0 : i32
    %c0_i32_1 = arith.constant 0 : i32
    return %c0_i32, %c0_i32_0 : i32, i32
  }
  func.func @transform_4(%arg0: i32) -> (i32, i32) {
    %c0_i32 = arith.constant 0 : i32
    %c0_i32_0 = arith.constant 0 : i32
    %c0_i32_1 = arith.constant 0 : i32
    return %c0_i32, %c0_i32_0 : i32, i32
  }
  func.func @transform_5(%arg0: i32) -> (i32, i32) {
    %c0_i32 = arith.constant 0 : i32
    %c0_i32_0 = arith.constant 0 : i32
    return %c0_i32, %arg0 : i32, i32
  }
}

</mosaic_0001>

<llo_original>
// kernel: tpu_custom_call.1
$region0: #{tpu_custom_call.1}
  #allocation0 [shape = 'u32[]', space=smem, size = 0x4, offset = 0x4, fixed_abs, tag = 'smem constant byte address 0x4 - core index']
  #allocation1 [shape = 'u32[144,128]{1,0:T(1,128)}', space=vmem, size = 0x12000, scoped, tag = 'internal scratch']
  %s0 = inlined_call_operand.hbm [shape: f32[16,512], index: 0, kind: input, shape index: {}]
  %s1 = inlined_call_operand.vmem [shape: f32[16,16], index: 1, kind: input, shape index: {}]
  %s2 = inlined_call_operand.vmem [shape: f32[16,1], index: 2, kind: input, shape index: {}]
  %s3 = inlined_call_operand.vmem [shape: f32[2,16], index: 3, kind: input, shape index: {}]
  %s4 = inlined_call_operand.vmem [shape: f32[2,1], index: 4, kind: input, shape index: {}]
  %s5 = inlined_call_operand.hbm [shape: f32[1,512], index: 5, kind: output, shape index: {}]
  %s6 = sld [smem:[#allocation0]]
  $region34: #{tpu_custom_call.1} parent=0
    _
  %s8 = ssub.s32 1, %s6
  %s9 = scalar_select 0, %s8, %s6
  $region1: #{tpu_custom_call.1} parent=0
    #allocation2 [shape = 'u8[32768]{0}', space=vmem, size = 0x8000, scoped, tag = 'input window, operand 0, single buffered']
    #allocation3 [shape = 's32[1]{0}', space=sflag, size = 0x4, scoped, tag = 'scoped memory for tpu_custom_call.1']
    #allocation4 [shape = 's32[1]{0}', space=sflag, size = 0x4, scoped, tag = 'scoped memory for tpu_custom_call.1']
    #allocation5 [shape = 'u8[2048]{0}', space=vmem, size = 0x800, scoped, tag = 'output window, operand 0, single buffered']
    %10 = vsyncpa [#allocation3], 0
    %11 = vsyncpa [#allocation4], 0
    // Predicated region
    $region2: #{tpu_custom_call.1} parent=1 // pred_check
      _
    $region3: #{tpu_custom_call.1} parent=1 // pred_check_branch
      %13 = sbr.rel (0) target = $region5
    $region4: #{tpu_custom_call.1} parent=1 // pred_region
      %s15 = ssub.s32 1024, 1024
      %16 = vsyncadd [#allocation3], %s15
      %s17 = sshll.u32 [#allocation2], 4
      %s18 = int_to_ptr.vmem [resolvable:$true] %s17
      %23 = dma.hbm_to_vmem [thread:$0]  %s0, 1024, %s18, [#allocation3], 512, 512, 32
    $region5: #{tpu_custom_call.1} parent=1 // pred_fallthru
      _
    // Predicated region
    $region6: #{tpu_custom_call.1} parent=1 // pred_check
      _
    $region7: #{tpu_custom_call.1} parent=1 // pred_check_branch
      %25 = sbr.rel (0) target = $region9
    $region8: #{tpu_custom_call.1} parent=1 // pred_region
      _
    $region9: #{tpu_custom_call.1} parent=1 // pred_fallthru
      _
    // Predicated region
    $region10: #{tpu_custom_call.1} parent=1 // pred_check
      _
    $region11: #{tpu_custom_call.1} parent=1 // pred_check_branch
      %27 = sbr.rel (0) target = $region13
    $region12: #{tpu_custom_call.1} parent=1 // pred_region
      _
    $region13: #{tpu_custom_call.1} parent=1 // pred_fallthru
      _
    // Predicated region
    $region14: #{tpu_custom_call.1} parent=1 // pred_check
      _
    $region15: #{tpu_custom_call.1} parent=1 // pred_check_branch
      %29 = sbr.rel (0) target = $region17
    $region16: #{tpu_custom_call.1} parent=1 // pred_region
      _
    $region17: #{tpu_custom_call.1} parent=1 // pred_fallthru
      _
    // Predicated region
    $region18: #{tpu_custom_call.1} parent=1 // pred_check
      _
    $region19: #{tpu_custom_call.1} parent=1 // pred_check_branch
      %31 = sbr.rel (0) target = $region21
    $region20: #{tpu_custom_call.1} parent=1 // pred_region
      _
    $region21: #{tpu_custom_call.1} parent=1 // pred_fallthru
      _
    // Predicated region
    $region22: #{tpu_custom_call.1} parent=1 // pred_check
      _
    $region23: #{tpu_custom_call.1} parent=1 // pred_check_branch
      %33 = sbr.rel (0) target = $region25
    $region24: #{tpu_custom_call.1} parent=1 // pred_region
      %34 = dma.done [#allocation3], 1024
    $region25: #{tpu_custom_call.1} parent=1 // pred_fallthru
      _
    %v35 = vld [vmem:[#allocation2] sm:$0xff]
    %v36 = vld [vmem:[#allocation2 + $0x8] sm:$0xff]
    %v37 = vld [vmem:[#allocation2 + $0x10] sm:$0xff]
    %v38 = vld [vmem:[#allocation2 + $0x18] sm:$0xff]
    %v39 = vld [vmem:[#allocation2 + $0x20] sm:$0xff]
    %v40 = vld [vmem:[#allocation2 + $0x28] sm:$0xff]
    %v41 = vld [vmem:[#allocation2 + $0x30] sm:$0xff]
    %v42 = vld [vmem:[#allocation2 + $0x38] sm:$0xff]
    %v43 = vld [vmem:[%s1] sm:$0xff]
    %v44 = vld [vmem:[%s1 + $0x8] sm:$0xff]
    %v45 = vld [vmem:[%s2] sm:$0xff]
    %v46 = vld [vmem:[%s2 + $0x8] sm:$0xff]
    %48 = vset.pattern.permute.xlu0 0
    %49 = vperm.xlu0 %48, %v45
    %v50 = vpop.permute.xlu0 %49
    %53 = vset.pattern.permute.xlu0 0
    %54 = vperm.xlu0 %53, %v46
    %v55 = vpop.permute.xlu0 %54
    %vm57 = vcmask 130048
    %v59 = vsel %vm57, %v43, 0
    %v62 = vsel %vm57, %v44, 0
    %64 = vmatprep.subr.mxu0 %v36
    %65 = vmatpush1.msra.mxu0 %v35
    %66 = vmatprep.subr.mxu0 %v40
    %67 = vmatpush1.msra.mxu0 %v39
    %68 = vmatprep.subr.mxu0 0.0
    %69 = vmatpush1.msra.mxu0 0.0
    %70 = vmatprep.subr.mxu0 0.0
    %71 = vmatpush1.msra.mxu0 0.0
    %72 = vmatprep.subr.mxu0 0.0
    %73 = vmatpush1.msra.mxu0 0.0
    %74 = vmatprep.subr.mxu0 0.0
    %75 = vmatpush1.msra.mxu0 0.0
    %76 = vmatprep.subr.mxu0 0.0
    %77 = vmatpush1.msra.mxu0 0.0
    %78 = vmatprep.subr.mxu0 0.0
    %79 = vmatpush1.msra.mxu0 0.0
    %80 = vmatprep.subr.mxu0 0.0
    %81 = vmatpush1.msra.mxu0 0.0
    %82 = vmatprep.subr.mxu0 0.0
    %83 = vmatpush1.msra.mxu0 0.0
    %84 = vmatprep.subr.mxu0 0.0
    %85 = vmatpush1.msra.mxu0 0.0
    %86 = vmatprep.subr.mxu0 0.0
    %87 = vmatpush1.msra.mxu0 0.0
    %88 = vmatprep.subr.mxu0 0.0
    %89 = vmatpush1.msra.mxu0 0.0
    %90 = vmatprep.subr.mxu0 0.0
    %91 = vmatpush1.msra.mxu0 0.0
    %92 = vmatprep.subr.mxu0 0.0
    %93 = vmatpush1.msra.mxu0 0.0
    %94 = vmatprep.subr.mxu0 0.0
    %95 = vmatpush1.msra.mxu0 0.0
    %96 = vmatprep.subr.mxu0 0.0
    %97 = vmatpush1.msra.mxu0 0.0
    %98 = vmatprep.subr.mxu0 0.0
    %99 = vmatpush1.msra.mxu0 0.0
    %100 = vmatprep.subr.mxu0 0.0
    %101 = vmatpush1.msra.mxu0 0.0
    %102 = vmatprep.subr.mxu0 0.0
    %103 = vmatpush1.msra.mxu0 0.0
    %104 = vmatprep.subr.mxu0 0.0
    %105 = vmatpush1.msra.mxu0 0.0
    %106 = vmatprep.subr.mxu0 0.0
    %107 = vmatpush1.msra.mxu0 0.0
    %108 = vmatprep.subr.mxu0 0.0
    %109 = vmatpush1.msra.mxu0 0.0
    %110 = vmatprep.subr.mxu0 0.0
    %111 = vmatpush1.msra.mxu0 0.0
    %112 = vmatprep.subr.mxu0 0.0
    %113 = vmatpush1.msra.mxu0 0.0
    %114 = vmatprep.subr.mxu0 0.0
    %115 = vmatpush1.msra.mxu0 0.0
    %116 = vmatprep.subr.mxu0 0.0
    %117 = vmatpush1.msra.mxu0 0.0
    %118 = vmatprep.subr.mxu0 0.0
    %119 = vmatpush1.msra.mxu0 0.0
    %120 = vmatprep.subr.mxu0 0.0
    %121 = vmatpush1.msra.mxu0 0.0
    %122 = vmatprep.subr.mxu0 0.0
    %123 = vmatpush1.msra.mxu0 0.0
    %124 = vmatprep.subr.mxu0 0.0
    %125 = vmatpush1.msra.mxu0 0.0
    %126 = vmatprep.subr.mxu0 0.0
    %127 = vmatpush1.msra.mxu0 0.0
    %128 = vmatprep.mubr.f32.mxu0 0.0
    %129 = vmatmul.mubr.f32.gmra.mrb[0].mxu0 %v59
    %v130 = vpop.f32.mrb[0].mxu0
    %v131 = vadd.f32 %v50, %v130
    %v132 = vpop.f32.mrb[0].mxu0
    %v133 = vadd.f32 %v50, %v132
    %134 = vmatprep.mubr.f32.mxu0 0.0
    %135 = vmatmul.mubr.f32.gmra.mrb[0].mxu0 %v62
    %v136 = vpop.f32.mrb[0].mxu0
    %v137 = vadd.f32 %v55, %v136
    %v138 = vpop.f32.mrb[0].mxu0
    %v139 = vadd.f32 %v55, %v138
    %140 = vdwg.mxu0
    %141 = vmatprep.subr.mxu0 %v38
    %142 = vmatpush1.msra.mxu0 %v37
    %143 = vmatprep.subr.mxu0 %v42
    %144 = vmatpush1.msra.mxu0 %v41
    %145 = vmatprep.subr.mxu0 0.0
    %146 = vmatpush1.msra.mxu0 0.0
    %147 = vmatprep.subr.mxu0 0.0
    %148 = vmatpush1.msra.mxu0 0.0
    %149 = vmatprep.subr.mxu0 0.0
    %150 = vmatpush1.msra.mxu0 0.0
    %151 = vmatprep.subr.mxu0 0.0
    %152 = vmatpush1.msra.mxu0 0.0
    %153 = vmatprep.subr.mxu0 0.0
    %154 = vmatpush1.msra.mxu0 0.0
    %155 = vmatprep.subr.mxu0 0.0
    %156 = vmatpush1.msra.mxu0 0.0
    %157 = vmatprep.subr.mxu0 0.0
    %158 = vmatpush1.msra.mxu0 0.0
    %159 = vmatprep.subr.mxu0 0.0
    %160 = vmatpush1.msra.mxu0 0.0
    %161 = vmatprep.subr.mxu0 0.0
    %162 = vmatpush1.msra.mxu0 0.0
    %163 = vmatprep.subr.mxu0 0.0
    %164 = vmatpush1.msra.mxu0 0.0
    %165 = vmatprep.subr.mxu0 0.0
    %166 = vmatpush1.msra.mxu0 0.0
    %167 = vmatprep.subr.mxu0 0.0
    %168 = vmatpush1.msra.mxu0 0.0
    %169 = vmatprep.subr.mxu0 0.0
    %170 = vmatpush1.msra.mxu0 0.0
    %171 = vmatprep.subr.mxu0 0.0
    %172 = vmatpush1.msra.mxu0 0.0
    %173 = vmatprep.subr.mxu0 0.0
    %174 = vmatpush1.msra.mxu0 0.0
    %175 = vmatprep.subr.mxu0 0.0
    %176 = vmatpush1.msra.mxu0 0.0
    %177 = vmatprep.subr.mxu0 0.0
    %178 = vmatpush1.msra.mxu0 0.0
    %179 = vmatprep.subr.mxu0 0.0
    %180 = vmatpush1.msra.mxu0 0.0
    %181 = vmatprep.subr.mxu0 0.0
    %182 = vmatpush1.msra.mxu0 0.0
    %183 = vmatprep.subr.mxu0 0.0
    %184 = vmatpush1.msra.mxu0 0.0
    %185 = vmatprep.subr.mxu0 0.0
    %186 = vmatpush1.msra.mxu0 0.0
    %187 = vmatprep.subr.mxu0 0.0
    %188 = vmatpush1.msra.mxu0 0.0
    %189 = vmatprep.subr.mxu0 0.0
    %190 = vmatpush1.msra.mxu0 0.0
    %191 = vmatprep.subr.mxu0 0.0
    %192 = vmatpush1.msra.mxu0 0.0
    %193 = vmatprep.subr.mxu0 0.0
    %194 = vmatpush1.msra.mxu0 0.0
    %195 = vmatprep.subr.mxu0 0.0
    %196 = vmatpush1.msra.mxu0 0.0
    %197 = vmatprep.subr.mxu0 0.0
    %198 = vmatpush1.msra.mxu0 0.0
    %199 = vmatprep.subr.mxu0 0.0
    %200 = vmatpush1.msra.mxu0 0.0
    %201 = vmatprep.subr.mxu0 0.0
    %202 = vmatpush1.msra.mxu0 0.0
    %203 = vmatprep.subr.mxu0 0.0
    %204 = vmatpush1.msra.mxu0 0.0
    %205 = vmatprep.mubr.f32.mxu0 0.0
    %206 = vmatmul.mubr.f32.gmra.mrb[0].mxu0 %v59
    %v207 = vpop.f32.mrb[0].mxu0
    %v208 = vadd.f32 %v50, %v207
    %v209 = vpop.f32.mrb[0].mxu0
    %v210 = vadd.f32 %v50, %v209
    %211 = vmatprep.mubr.f32.mxu0 0.0
    %212 = vmatmul.mubr.f32.gmra.mrb[0].mxu0 %v62
    %v213 = vpop.f32.mrb[0].mxu0
    %v214 = vadd.f32 %v55, %v213
    %v215 = vpop.f32.mrb[0].mxu0
    %v216 = vadd.f32 %v55, %v215
    %217 = vdwg.mxu0
    %v218 = vmax.f32 %v131, 0.0
    %v219 = vmax.f32 %v133, 0.0
    %v220 = vmax.f32 %v208, 0.0
    %v221 = vmax.f32 %v210, 0.0
    %v222 = vmax.f32 %v137, 0.0
    %v223 = vmax.f32 %v139, 0.0
    %v224 = vmax.f32 %v214, 0.0
    %v225 = vmax.f32 %v216, 0.0
    %v226 = vld [vmem:[%s3] sm:$0x3]
    %v227 = vld [vmem:[%s4] sm:$0x3]
    %229 = vset.pattern.permute.xlu0 0
    %230 = vperm.xlu0 %229, %v227
    %v231 = vpop.permute.xlu0 %230
    %v234 = vsel %vm57, %v226, 0
    %236 = vmatprep.subr.mxu0 %v219
    %237 = vmatpush1.msra.mxu0 %v218
    %238 = vmatprep.subr.mxu0 %v223
    %239 = vmatpush1.msra.mxu0 %v222
    %240 = vmatprep.subr.mxu0 0.0
    %241 = vmatpush1.msra.mxu0 0.0
    %242 = vmatprep.subr.mxu0 0.0
    %243 = vmatpush1.msra.mxu0 0.0
    %244 = vmatprep.subr.mxu0 0.0
    %245 = vmatpush1.msra.mxu0 0.0
    %246 = vmatprep.subr.mxu0 0.0
    %247 = vmatpush1.msra.mxu0 0.0
    %248 = vmatprep.subr.mxu0 0.0
    %249 = vmatpush1.msra.mxu0 0.0
    %250 = vmatprep.subr.mxu0 0.0
    %251 = vmatpush1.msra.mxu0 0.0
    %252 = vmatprep.subr.mxu0 0.0
    %253 = vmatpush1.msra.mxu0 0.0
    %254 = vmatprep.subr.mxu0 0.0
    %255 = vmatpush1.msra.mxu0 0.0
    %256 = vmatprep.subr.mxu0 0.0
    %257 = vmatpush1.msra.mxu0 0.0
    %258 = vmatprep.subr.mxu0 0.0
    %259 = vmatpush1.msra.mxu0 0.0
    %260 = vmatprep.subr.mxu0 0.0
    %261 = vmatpush1.msra.mxu0 0.0
    %262 = vmatprep.subr.mxu0 0.0
    %263 = vmatpush1.msra.mxu0 0.0
    %264 = vmatprep.subr.mxu0 0.0
    %265 = vmatpush1.msra.mxu0 0.0
    %266 = vmatprep.subr.mxu0 0.0
    %267 = vmatpush1.msra.mxu0 0.0
    %268 = vmatprep.subr.mxu0 0.0
    %269 = vmatpush1.msra.mxu0 0.0
    %270 = vmatprep.subr.mxu0 0.0
    %271 = vmatpush1.msra.mxu0 0.0
    %272 = vmatprep.subr.mxu0 0.0
    %273 = vmatpush1.msra.mxu0 0.0
    %274 = vmatprep.subr.mxu0 0.0
    %275 = vmatpush1.msra.mxu0 0.0
    %276 = vmatprep.subr.mxu0 0.0
    %277 = vmatpush1.msra.mxu0 0.0
    %278 = vmatprep.subr.mxu0 0.0
    %279 = vmatpush1.msra.mxu0 0.0
    %280 = vmatprep.subr.mxu0 0.0
    %281 = vmatpush1.msra.mxu0 0.0
    %282 = vmatprep.subr.mxu0 0.0
    %283 = vmatpush1.msra.mxu0 0.0
    %284 = vmatprep.subr.mxu0 0.0
    %285 = vmatpush1.msra.mxu0 0.0
    %286 = vmatprep.subr.mxu0 0.0
    %287 = vmatpush1.msra.mxu0 0.0
    %288 = vmatprep.subr.mxu0 0.0
    %289 = vmatpush1.msra.mxu0 0.0
    %290 = vmatprep.subr.mxu0 0.0
    %291 = vmatpush1.msra.mxu0 0.0
    %292 = vmatprep.subr.mxu0 0.0
    %293 = vmatpush1.msra.mxu0 0.0
    %294 = vmatprep.subr.mxu0 0.0
    %295 = vmatpush1.msra.mxu0 0.0
    %296 = vmatprep.subr.mxu0 0.0
    %297 = vmatpush1.msra.mxu0 0.0
    %298 = vmatprep.subr.mxu0 0.0
    %299 = vmatpush1.msra.mxu0 0.0
    %300 = vmatprep.mubr.f32.mxu0 0.0
    %301 = vmatmul.mubr.f32.gmra.mrb[0].mxu0 %v234
    %v302 = vpop.f32.mrb[0].mxu0
    %v303 = vadd.f32 %v231, %v302
    %v304 = vpop.f32.mrb[0].mxu0
    %v305 = vadd.f32 %v231, %v304
    %306 = vdwg.mxu0
    %307 = vmatprep.subr.mxu0 %v221
    %308 = vmatpush1.msra.mxu0 %v220
    %309 = vmatprep.subr.mxu0 %v225
    %310 = vmatpush1.msra.mxu0 %v224
    %311 = vmatprep.subr.mxu0 0.0
    %312 = vmatpush1.msra.mxu0 0.0
    %313 = vmatprep.subr.mxu0 0.0
    %314 = vmatpush1.msra.mxu0 0.0
    %315 = vmatprep.subr.mxu0 0.0
    %316 = vmatpush1.msra.mxu0 0.0
    %317 = vmatprep.subr.mxu0 0.0
    %318 = vmatpush1.msra.mxu0 0.0
    %319 = vmatprep.subr.mxu0 0.0
    %320 = vmatpush1.msra.mxu0 0.0
    %321 = vmatprep.subr.mxu0 0.0
    %322 = vmatpush1.msra.mxu0 0.0
    %323 = vmatprep.subr.mxu0 0.0
    %324 = vmatpush1.msra.mxu0 0.0
    %325 = vmatprep.subr.mxu0 0.0
    %326 = vmatpush1.msra.mxu0 0.0
    %327 = vmatprep.subr.mxu0 0.0
    %328 = vmatpush1.msra.mxu0 0.0
    %329 = vmatprep.subr.mxu0 0.0
    %330 = vmatpush1.msra.mxu0 0.0
    %331 = vmatprep.subr.mxu0 0.0
    %332 = vmatpush1.msra.mxu0 0.0
    %333 = vmatprep.subr.mxu0 0.0
    %334 = vmatpush1.msra.mxu0 0.0
    %335 = vmatprep.subr.mxu0 0.0
    %336 = vmatpush1.msra.mxu0 0.0
    %337 = vmatprep.subr.mxu0 0.0
    %338 = vmatpush1.msra.mxu0 0.0
    %339 = vmatprep.subr.mxu0 0.0
    %340 = vmatpush1.msra.mxu0 0.0
    %341 = vmatprep.subr.mxu0 0.0
    %342 = vmatpush1.msra.mxu0 0.0
    %343 = vmatprep.subr.mxu0 0.0
    %344 = vmatpush1.msra.mxu0 0.0
    %345 = vmatprep.subr.mxu0 0.0
    %346 = vmatpush1.msra.mxu0 0.0
    %347 = vmatprep.subr.mxu0 0.0
    %348 = vmatpush1.msra.mxu0 0.0
    %349 = vmatprep.subr.mxu0 0.0
    %350 = vmatpush1.msra.mxu0 0.0
    %351 = vmatprep.subr.mxu0 0.0
    %352 = vmatpush1.msra.mxu0 0.0
    %353 = vmatprep.subr.mxu0 0.0
    %354 = vmatpush1.msra.mxu0 0.0
    %355 = vmatprep.subr.mxu0 0.0
    %356 = vmatpush1.msra.mxu0 0.0
    %357 = vmatprep.subr.mxu0 0.0
    %358 = vmatpush1.msra.mxu0 0.0
    %359 = vmatprep.subr.mxu0 0.0
    %360 = vmatpush1.msra.mxu0 0.0
    %361 = vmatprep.subr.mxu0 0.0
    %362 = vmatpush1.msra.mxu0 0.0
    %363 = vmatprep.subr.mxu0 0.0
    %364 = vmatpush1.msra.mxu0 0.0
    %365 = vmatprep.subr.mxu0 0.0
    %366 = vmatpush1.msra.mxu0 0.0
    %367 = vmatprep.subr.mxu0 0.0
    %368 = vmatpush1.msra.mxu0 0.0
    %369 = vmatprep.subr.mxu0 0.0
    %370 = vmatpush1.msra.mxu0 0.0
    %371 = vmatprep.mubr.f32.mxu0 0.0
    %372 = vmatmul.mubr.f32.gmra.mrb[0].mxu0 %v234
    %v373 = vpop.f32.mrb[0].mxu0
    %v374 = vadd.f32 %v231, %v373
    %v375 = vpop.f32.mrb[0].mxu0
    %v376 = vadd.f32 %v231, %v375
    %377 = vdwg.mxu0
    %v378 = vxor.u32 %v303, 2147483648
    %v379 = vxor.u32 %v305, 2147483648
    %v380 = vxor.u32 %v374, 2147483648
    %v381 = vxor.u32 %v376, 2147483648
    %v382 = vmul.f32 %v378, 1.442695
    %v383 = vpow.pop %v382
    %v384 = vmul.f32 %v379, 1.442695
    %v385 = vpow.pop %v384
    %v386 = vmul.f32 %v380, 1.442695
    %v387 = vpow.pop %v386
    %v388 = vmul.f32 %v381, 1.442695
    %v389 = vpow.pop %v388
    %v390 = vadd.f32 %v383, 1.0
    %v391 = vadd.f32 %v385, 1.0
    %v392 = vadd.f32 %v387, 1.0
    %v393 = vadd.f32 %v389, 1.0
    %v394 = vrcp.pop %v390
    %v395 = vmul.f32 1.0, %v394
    %v396 = vrcp.pop %v391
    %v397 = vmul.f32 1.0, %v396
    %v398 = vrcp.pop %v392
    %v399 = vmul.f32 1.0, %v398
    %v400 = vrcp.pop %v393
    %v401 = vmul.f32 1.0, %v400
    %v402 = vadd.f32 %v395, 1.0
    %v403 = vadd.f32 %v397, 1.0
    %v404 = vadd.f32 %v399, 1.0
    %v405 = vadd.f32 %v401, 1.0
    %v410 = vrot.slane %v402, 7
    %v411 = vrot.slane %v403, 7
    %v412 = vrot.slane %v404, 7
    %v413 = vrot.slane %v405, 7
    %v418 = vmul.f32 %v303, %v410
    %v419 = vmul.f32 %v305, %v411
    %v420 = vmul.f32 %v374, %v412
    %v421 = vmul.f32 %v376, %v413
    %v422 = vmul.f32 %v418, 0.001953125
    %v423 = vmul.f32 %v419, 0.001953125
    %v424 = vmul.f32 %v420, 0.001953125
    %v425 = vmul.f32 %v421, 0.001953125
    %v430 = vcombine.low %v422, %v423
    %v431 = vcombine.low %v424, %v425
    %v433 = vunpack.c.l.s4 1966171168
    %v434 = vunpack.c.0.s8 %v433
    %v435 = vlaneseq
    %v436 = vshrl.u32 %v435, 7
    %v437 = vsub.s32 %v434, %v436
    %v438 = vrot.slane %v430, %v437
    %v440 = vunpack.c.l.s4 1966171168
    %v441 = vunpack.c.0.s8 %v440
    %v442 = vlaneseq
    %v443 = vshrl.u32 %v442, 7
    %v444 = vsub.s32 %v441, %v443
    %v445 = vrot.slane %v431, %v444
    %v446 = vcombine.high %v438, %v445
    %v448 = vunpack.c.l.s4 1966171168
    %v449 = vunpack.c.0.s8 %v448
    %v450 = vlaneseq
    %v451 = vshrl.u32 %v450, 7
    %v452 = vsub.s32 %v449, %v451
    %v453 = vrot.slane %v446, %v452
    %v455 = vlaneseq
    %vm456 = vcmp.ge.s32.totalorder %v455, 0
    %vm457 = vcmp.lt.s32.totalorder %v455, 512
    %vm458 = vmand %vm456, %vm457
    %459 = vst.msk [vmem:[#allocation5] sm:$0xf] %vm458, %v453
    // Predicated region
    $region26: #{tpu_custom_call.1} parent=1 // pred_check
      _
    $region27: #{tpu_custom_call.1} parent=1 // pred_check_branch
      %461 = sbr.rel (0) target = $region29
    $region28: #{tpu_custom_call.1} parent=1 // pred_region
      %s463 = ssub.s32 64, 64
      %464 = vsyncadd [#allocation4], %s463
      %s466 = sshll.u32 [#allocation5], 4
      %s467 = int_to_ptr.vmem [resolvable:$true] %s466
      %469 = dma.vmem_to_hbm [thread:$0]  %s467, 64, %s5, [#allocation4]
    $region29: #{tpu_custom_call.1} parent=1 // pred_fallthru
      _
    // Predicated region
    $region30: #{tpu_custom_call.1} parent=1 // pred_check
      _
    $region31: #{tpu_custom_call.1} parent=1 // pred_check_branch
      %471 = sbr.rel (0) target = $region33
    $region32: #{tpu_custom_call.1} parent=1 // pred_region
      %472 = dma.done [#allocation4], 64
    $region33: #{tpu_custom_call.1} parent=1 // pred_fallthru
      _
    %473 = vsyncpa [#allocation3], 1
    %474 = vsyncpa [#allocation4], 1

</llo_original>
